<compile_context>
chip_gen: v7x
topology: tpu7x:2x2x1
jax: 0.10.0
libtpu: 0.0.40
codegen_flags: <defaults>
</compile_context>

<pallas_src>
import functools

import jax
import jax.numpy as jnp
from jax import lax
from jax.experimental import pallas as pl
from jax.experimental.pallas import tpu as pltpu


def _contrastive_kernel(lab_col_ref, lab_row_ref, f1_ref, f2_ref, out_ref,
                        m_scr, pos_scr, tot_scr, *, inv_temp, tile_i, tile_j):
    i = pl.program_id(0)
    j = pl.program_id(1)

    @pl.when(j == 0)
    def _init():
        m_scr[...] = jnp.full_like(m_scr, -jnp.inf)
        pos_scr[...] = jnp.zeros_like(pos_scr)
        tot_scr[...] = jnp.zeros_like(tot_scr)

    # MXU matmul: contract the last dim of both tiles (standard attention-style
    # Q·K^T form, no explicit transpose), f32 accumulate (bf16-friendly inputs).
    s = lax.dot_general(
        f1_ref[...], f2_ref[...],
        dimension_numbers=(((1,), (1,)), ((), ())),
        preferred_element_type=jnp.float32) * inv_temp          # (ti, tj) f32

    # Diagonal (global row == global col) -> -inf: zeroes the diagonal after exp
    # and keeps it out of the running row max.  Only blocks whose row/col ranges
    # overlap can touch the diagonal; skip the per-element mask work elsewhere.
    row0 = i * tile_i
    col0 = j * tile_j

    def _mask_diag(x):
        r = lax.broadcasted_iota(jnp.int32, (tile_i, 1), 0) + row0   # (ti, 1)
        c = lax.broadcasted_iota(jnp.int32, (1, tile_j), 1) + col0   # (1, tj)
        return jnp.where(r == c, -jnp.inf, x)

    straddles = jnp.logical_and(row0 < col0 + tile_j, col0 < row0 + tile_i)
    s = lax.cond(straddles, _mask_diag, lambda x: x, s)

    # Online (rescaled) accumulation; the max shift cancels in pos/total.
    m_prev = m_scr[...]                                         # (ti, 1)
    m_new = jnp.maximum(m_prev, jnp.max(s, axis=1, keepdims=True))
    alpha = jnp.exp(m_prev - m_new)
    p = jnp.exp(s - m_new)                                      # diag -> exp(-inf) = 0

    # Positive mask as a select on a broadcast compare (no float mask multiply).
    label_eq = lab_col_ref[...] == lab_row_ref[...]             # (ti,1)==(1,tj) -> (ti,tj)
    pos_scr[...] = alpha * pos_scr[...] + jnp.sum(
        jnp.where(label_eq, p, 0.0), axis=1, keepdims=True)
    tot_scr[...] = alpha * tot_scr[...] + jnp.sum(p, axis=1, keepdims=True)
    m_scr[...] = m_new

    @pl.when(j == pl.num_programs(1) - 1)
    def _finalize():
        # -log(pos / total) == log(total) - log(pos); running max cancels exactly.
        out_ref[...] = jnp.log(tot_scr[...]) - jnp.log(pos_scr[...])


def _vmem_capacity_bytes():
    """Physical VMEM of the local chip; conservative 64 MiB fallback (v7x-safe)."""
    try:
        cap = getattr(pltpu.get_tpu_info(), "vmem_capacity_bytes", None)
        if cap:
            return int(cap)
    except Exception:
        pass
    return 64 * 1024 * 1024


def _num_tensorcores():
    """Best-effort TensorCore count (2 on v7x / megacore chips); defaults to 1."""
    try:
        info = pltpu.get_tpu_info()
        for attr in ("num_cores", "core_count", "num_tensorcores", "tensorcore_count"):
            v = getattr(info, attr, None)
            if v:
                try:
                    v = int(v)
                    if v > 0:
                        return v
                except Exception:
                    pass
    except Exception:
        pass
    try:
        v = getattr(jax.devices()[0], "num_cores", None)
        if v:
            return max(1, int(v))
    except Exception:
        pass
    return 1


def _pick_tile(n, target, unit):
    """Largest tile <= target that divides n and is a multiple of `unit`
    (falls back to the full dimension, which is always layout-legal)."""
    if n <= target:
        return n
    t = (target // unit) * unit
    while t >= unit and n % t:
        t -= unit
    return t if t >= unit else n


def _select_tiles(B, D, itemsize, block_i, block_j, budget_bytes, n_cores):
    # bf16 packs 2 rows per sublane -> tile_i % 16; int8/fp8 -> 32; f32 -> 8.
    unit_i = {4: 8, 2: 16, 1: 32}.get(itemsize, 8)
    unit_j = 128

    # tile_i is the knob that cuts f2 HBM re-streaming (streamed B/tile_i times);
    # f32 needs ~2x the rows of bf16 for the same flop/byte.
    ti_target = block_i if block_i is not None else (1024 if itemsize <= 2 else 2048)
    tj_target = block_j if block_j is not None else 1024

    # Multi-TC chips (v7x): keep >= n_cores row blocks so every core gets work.
    if n_cores > 1 and B >= n_cores * unit_i:
        cap_i = max(unit_i, (B // n_cores) // unit_i * unit_i)
        ti_target = min(ti_target, cap_i)

    ti = _pick_tile(B, ti_target, unit_i)
    tj = _pick_tile(B, tj_target, unit_j)

    def vmem_use(ti_, tj_):
        # double-buffered feature tiles + f32 score/prob intermediates + small refs
        return (2 * (ti_ + tj_) * D * itemsize
                + 4 * ti_ * tj_ * 4
                + 32 * (ti_ + tj_))

    # Shrink to the per-generation budget; shrink tj first (ti cuts HBM traffic).
    while vmem_use(ti, tj) > budget_bytes:
        if tj > unit_j:
            new_tj = _pick_tile(B, max(unit_j, tj // 2), unit_j)
            if new_tj < tj:
                tj = new_tj
                continue
        if ti > unit_i:
            new_ti = _pick_tile(B, max(unit_i, ti // 2), unit_i)
            if new_ti < ti:
                ti = new_ti
                continue
        break  # cannot shrink further (awkward B); run with what we have

    return ti, tj, vmem_use(ti, tj)


def contrastive_loss(features1, features2, labels, temperature=0.5,
                     block_i=None, block_j=None, compute_dtype=None):
    """Pallas implementation of ContrastiveLoss.forward.

    Pass `compute_dtype=jnp.bfloat16` (or bf16 features) for best HBM/MXU
    throughput; accumulation is always f32.
    """
    B, D = features1.shape
    assert features2.shape == (B, D)

    if compute_dtype is not None:
        features1 = features1.astype(compute_dtype)
        features2 = features2.astype(compute_dtype)
    itemsize = jnp.dtype(features1.dtype).itemsize

    cap = _vmem_capacity_bytes()
    budget = int(cap * (0.78 if cap > (64 << 20) else 0.75))   # ~100 MiB v5e/v6e, ~48 MiB v7x
    n_cores = _num_tensorcores()

    ti, tj, est_vmem = _select_tiles(B, D, itemsize, block_i, block_j, budget, n_cores)
    n_i, n_j = B // ti, B // tj

    # Scoped-VMEM ceiling sized for the chosen tiles (defaults are 16/32 MiB).
    vmem_limit = int(min(cap * 0.9, max(budget, est_vmem + (4 << 20))))

    lab_col = labels.reshape(B, 1).astype(jnp.int32)
    lab_row = labels.reshape(1, B).astype(jnp.int32)

    kernel = functools.partial(_contrastive_kernel, inv_temp=1.0 / temperature,
                               tile_i=ti, tile_j=tj)

    cost = pl.CostEstimate(
        flops=2 * B * B * D,
        transcendentals=B * B,
        bytes_accessed=B * D * itemsize            # f1 (resident per i block)
        + n_i * B * D * itemsize                   # f2 streamed once per i block
        + 2 * B * 4 + B * 4,                       # labels + per-row output
    )

    row_loss = pl.pallas_call(
        kernel,
        out_shape=jax.ShapeDtypeStruct((B, 1), jnp.float32),
        grid_spec=pltpu.PrefetchScalarGridSpec(
            num_scalar_prefetch=0,
            grid=(n_i, n_j),
            in_specs=[
                pl.BlockSpec((ti, 1), lambda i, j: (i, 0)),   # labels, column layout
                pl.BlockSpec((1, tj), lambda i, j: (0, j)),   # labels, row layout
                pl.BlockSpec((ti, D), lambda i, j: (i, 0)),   # features1 tile
                pl.BlockSpec((tj, D), lambda i, j: (j, 0)),   # features2 tile
            ],
            out_specs=pl.BlockSpec((ti, 1), lambda i, j: (i, 0)),
            scratch_shapes=[
                pltpu.VMEM((ti, 1), jnp.float32),   # running row max
                pltpu.VMEM((ti, 1), jnp.float32),   # positive-sum accumulator
                pltpu.VMEM((ti, 1), jnp.float32),   # total-sum accumulator
            ],
        ),
        compiler_params=pltpu.CompilerParams(
            dimension_semantics=("parallel", "arbitrary"),
            vmem_limit_bytes=vmem_limit),
        cost_estimate=cost,
    )(lab_col, lab_row, features1, features2)

    # Tiny (B,) mean; cheaper as a plain XLA reduction than an extra kernel pass.
    return jnp.mean(row_loss)


def _reference(features1, features2, labels, temperature=0.5):
    """Pure-JAX reference matching the PyTorch semantics exactly."""
    sim = jnp.exp(features1.astype(jnp.float32) @ features2.astype(jnp.float32).T
                  / temperature)
    B = features1.shape[0]
    eye = jnp.eye(B, dtype=bool)
    sim = jnp.where(eye, 0.0, sim)
    pos_mask = (labels[None, :] == labels[:, None]).astype(jnp.float32)
    pos_mask = jnp.where(eye, 0.0, pos_mask)
    pos = jnp.sum(sim * pos_mask, axis=1)
    neg = jnp.sum(sim, axis=1) - pos
    return -jnp.mean(jnp.log(pos / (pos + neg)))


if __name__ == "__main__":
    key = jax.random.PRNGKey(0)
    k1, k2 = jax.random.split(key)

    B, D = 8, 32
    features1 = jax.random.normal(k1, (B, D), dtype=jnp.float32)
    features2 = jax.random.normal(k2, (B, D), dtype=jnp.float32)
    # Ensure every sample has at least one positive pair (a row with zero
    # positives gives log(0) = -inf, same as the PyTorch module).
    labels = jnp.array([0, 0, 1, 1, 2, 2, 3, 3], dtype=jnp.int32)

    loss = contrastive_loss(features1, features2, labels, temperature=0.5)
    loss = jax.block_until_ready(loss)

    ref = jax.block_until_ready(_reference(features1, features2, labels, 0.5))
    # 1e-5 tolerance holds for f32 inputs; bf16 inputs would loosen it to ~1e-2.
    assert jnp.allclose(loss, ref, rtol=1e-5, atol=1e-5), (loss, ref)

    print("KERNEL_OK")
</pallas_src>

<mosaic_0001>
module attributes {stable_mosaic.version = 11 : i64} {
  func.func @_contrastive_kernel(%arg0: i32, %arg1: i32, %arg2: memref<8x1xi32, #tpu.memory_space<vmem>>, %arg3: memref<1x8xi32, #tpu.memory_space<vmem>>, %arg4: memref<8x32xf32, #tpu.memory_space<vmem>>, %arg5: memref<8x32xf32, #tpu.memory_space<vmem>>, %arg6: memref<8x1xf32, #tpu.memory_space<vmem>>, %arg7: memref<8x1xf32, #tpu.memory_space<vmem>>, %arg8: memref<8x1xf32, #tpu.memory_space<vmem>>, %arg9: memref<8x1xf32, #tpu.memory_space<vmem>>) attributes {dimension_semantics = [#tpu.dimension_semantics<parallel>, #tpu.dimension_semantics<arbitrary>], iteration_bounds = array<i64: 1, 1>, scalar_prefetch = 0 : i64, scratch_operands = 3 : i64, tpu.core_type = #tpu.core_type<tc>, window_params = [{transform_indices = @transform_0, window_bounds = array<i64: 8, 1>}, {transform_indices = @transform_1, window_bounds = array<i64: 1, 8>}, {transform_indices = @transform_2, window_bounds = array<i64: 8, 32>}, {transform_indices = @transform_3, window_bounds = array<i64: 8, 32>}, {transform_indices = @transform_4, window_bounds = array<i64: 8, 1>}]} {
    %c0_i32 = arith.constant 0 : i32
    %0 = arith.cmpi eq, %arg1, %c0_i32 : i32
    %1 = arith.extui %0 : i1 to i32
    %c0_i32_0 = arith.constant 0 : i32
    %2 = arith.cmpi ne, %1, %c0_i32_0 : i32
    scf.if %2 {
      %cst_31 = arith.constant 0xFF800000 : f32
      %50 = vector.broadcast %cst_31 : f32 to vector<8x1xf32>
      %c0_32 = arith.constant 0 : index
      %c0_33 = arith.constant 0 : index
      %51 = vector.load %arg7[%c0_32, %c0_33] : memref<8x1xf32, #tpu.memory_space<vmem>>, vector<8x1xf32>
      tpu.vector_store %arg7[%c0_32, %c0_33], %50 {strides = array<i32>} : memref<8x1xf32, #tpu.memory_space<vmem>>, vector<8x1xf32>,
      %cst_34 = arith.constant 0.000000e+00 : f32
      %52 = vector.broadcast %cst_34 : f32 to vector<8x1xf32>
      %c0_35 = arith.constant 0 : index
      %c0_36 = arith.constant 0 : index
      %53 = vector.load %arg8[%c0_35, %c0_36] : memref<8x1xf32, #tpu.memory_space<vmem>>, vector<8x1xf32>
      tpu.vector_store %arg8[%c0_35, %c0_36], %52 {strides = array<i32>} : memref<8x1xf32, #tpu.memory_space<vmem>>, vector<8x1xf32>,
      %cst_37 = arith.constant 0.000000e+00 : f32
      %54 = vector.broadcast %cst_37 : f32 to vector<8x1xf32>
      %c0_38 = arith.constant 0 : index
      %c0_39 = arith.constant 0 : index
      %55 = vector.load %arg9[%c0_38, %c0_39] : memref<8x1xf32, #tpu.memory_space<vmem>>, vector<8x1xf32>
      tpu.vector_store %arg9[%c0_38, %c0_39], %54 {strides = array<i32>} : memref<8x1xf32, #tpu.memory_space<vmem>>, vector<8x1xf32>,
    } else {
    }
    %c0 = arith.constant 0 : index
    %c0_1 = arith.constant 0 : index
    %3 = vector.load %arg4[%c0, %c0_1] : memref<8x32xf32, #tpu.memory_space<vmem>>, vector<8x32xf32>
    %c0_2 = arith.constant 0 : index
    %c0_3 = arith.constant 0 : index
    %4 = vector.load %arg5[%c0_2, %c0_3] : memref<8x32xf32, #tpu.memory_space<vmem>>, vector<8x32xf32>
    %cst = arith.constant dense<0.000000e+00> : vector<8x8xf32>
    %5 = tpu.matmul %3, %4, %cst {dimension_numbers = #tpu.dot_dimension_numbers<[1], [1], [0], [0], [0, 0, 1, 0], [], []>} : vector<8x32xf32>, vector<8x32xf32>, vector<8x8xf32> -> vector<8x8xf32>
    %cst_4 = arith.constant 2.000000e+00 : f32
    %6 = vector.broadcast %cst_4 : f32 to vector<8x8xf32>
    %7 = arith.mulf %5, %6 : vector<8x8xf32>
    %c8_i32 = arith.constant 8 : i32
    %8 = arith.muli %arg0, %c8_i32 : i32
    %c8_i32_5 = arith.constant 8 : i32
    %9 = arith.muli %arg1, %c8_i32_5 : i32
    %c8_i32_6 = arith.constant 8 : i32
    %10 = arith.addi %9, %c8_i32_6 : i32
    %11 = arith.cmpi slt, %8, %10 : i32
    %c8_i32_7 = arith.constant 8 : i32
    %12 = arith.addi %8, %c8_i32_7 : i32
    %13 = arith.cmpi slt, %9, %12 : i32
    %14 = arith.andi %11, %13 : i1
    %15 = arith.extui %14 : i1 to i32
    %c0_i32_8 = arith.constant 0 : i32
    %16 = arith.cmpi ne, %15, %c0_i32_8 : i32
    %17 = scf.if %16 -> (vector<8x8xf32>) {
      %50 = tpu.iota {dimensions = array<i32: 0>} : vector<8x1xi32>
      %51 = vector.broadcast %8 : i32 to vector<8x1xi32>
      %52 = arith.addi %50, %51 : vector<8x1xi32>
      %53 = tpu.iota {dimensions = array<i32: 1>} : vector<1x8xi32>
      %54 = vector.broadcast %9 : i32 to vector<1x8xi32>
      %55 = arith.addi %53, %54 : vector<1x8xi32>
      %56 = vector.broadcast %52 : vector<8x1xi32> to vector<8x8xi32>
      %57 = vector.broadcast %55 : vector<1x8xi32> to vector<8x8xi32>
      %58 = arith.cmpi eq, %56, %57 : vector<8x8xi32>
      %cst_31 = arith.constant 0xFF800000 : f32
      %59 = vector.broadcast %cst_31 : f32 to vector<8x8xf32>
      %60 = arith.select %58, %59, %7 : vector<8x8xi1>, vector<8x8xf32>
      scf.yield %60 : vector<8x8xf32>
    } else {
      scf.yield %7 : vector<8x8xf32>
    }
    %c0_9 = arith.constant 0 : index
    %c0_10 = arith.constant 0 : index
    %18 = vector.load %arg7[%c0_9, %c0_10] : memref<8x1xf32, #tpu.memory_space<vmem>>, vector<8x1xf32>
    %cst_11 = arith.constant dense<0xFF800000> : vector<8xf32>
    %19 = vector.multi_reduction <maximumf>, %17, %cst_11 [1] : vector<8x8xf32> to vector<8xf32>
    %20 = vector.shape_cast %19 : vector<8xf32> to vector<8x1xf32>
    %21 = arith.maximumf %18, %20 : vector<8x1xf32>
    %22 = arith.subf %18, %21 : vector<8x1xf32>
    %23 = math.exp %22 : vector<8x1xf32>
    %24 = vector.broadcast %21 : vector<8x1xf32> to vector<8x8xf32>
    %25 = arith.subf %17, %24 : vector<8x8xf32>
    %26 = math.exp %25 : vector<8x8xf32>
    %c0_12 = arith.constant 0 : index
    %c0_13 = arith.constant 0 : index
    %27 = vector.load %arg2[%c0_12, %c0_13] : memref<8x1xi32, #tpu.memory_space<vmem>>, vector<8x1xi32>
    %c0_14 = arith.constant 0 : index
    %c0_15 = arith.constant 0 : index
    %28 = vector.load %arg3[%c0_14, %c0_15] : memref<1x8xi32, #tpu.memory_space<vmem>>, vector<1x8xi32>
    %29 = vector.broadcast %27 : vector<8x1xi32> to vector<8x8xi32>
    %30 = vector.broadcast %28 : vector<1x8xi32> to vector<8x8xi32>
    %31 = arith.cmpi eq, %29, %30 : vector<8x8xi32>
    %c0_16 = arith.constant 0 : index
    %c0_17 = arith.constant 0 : index
    %32 = vector.load %arg8[%c0_16, %c0_17] : memref<8x1xf32, #tpu.memory_space<vmem>>, vector<8x1xf32>
    %33 = arith.mulf %23, %32 : vector<8x1xf32>
    %cst_18 = arith.constant 0.000000e+00 : f32
    %34 = vector.broadcast %cst_18 : f32 to vector<8x8xf32>
    %35 = arith.select %31, %26, %34 : vector<8x8xi1>, vector<8x8xf32>
    %cst_19 = arith.constant dense<0.000000e+00> : vector<8xf32>
    %36 = vector.multi_reduction <add>, %35, %cst_19 [1] : vector<8x8xf32> to vector<8xf32>
    %37 = vector.shape_cast %36 : vector<8xf32> to vector<8x1xf32>
    %38 = arith.addf %33, %37 : vector<8x1xf32>
    %c0_20 = arith.constant 0 : index
    %c0_21 = arith.constant 0 : index
    %39 = vector.load %arg8[%c0_20, %c0_21] : memref<8x1xf32, #tpu.memory_space<vmem>>, vector<8x1xf32>
    tpu.vector_store %arg8[%c0_20, %c0_21], %38 {strides = array<i32>} : memref<8x1xf32, #tpu.memory_space<vmem>>, vector<8x1xf32>,
    %c0_22 = arith.constant 0 : index
    %c0_23 = arith.constant 0 : index
    %40 = vector.load %arg9[%c0_22, %c0_23] : memref<8x1xf32, #tpu.memory_space<vmem>>, vector<8x1xf32>
    %41 = arith.mulf %23, %40 : vector<8x1xf32>
    %cst_24 = arith.constant dense<0.000000e+00> : vector<8xf32>
    %42 = vector.multi_reduction <add>, %26, %cst_24 [1] : vector<8x8xf32> to vector<8xf32>
    %43 = vector.shape_cast %42 : vector<8xf32> to vector<8x1xf32>
    %44 = arith.addf %41, %43 : vector<8x1xf32>
    %c0_25 = arith.constant 0 : index
    %c0_26 = arith.constant 0 : index
    %45 = vector.load %arg9[%c0_25, %c0_26] : memref<8x1xf32, #tpu.memory_space<vmem>>, vector<8x1xf32>
    tpu.vector_store %arg9[%c0_25, %c0_26], %44 {strides = array<i32>} : memref<8x1xf32, #tpu.memory_space<vmem>>, vector<8x1xf32>,
    %c0_27 = arith.constant 0 : index
    %c0_28 = arith.constant 0 : index
    %46 = vector.load %arg7[%c0_27, %c0_28] : memref<8x1xf32, #tpu.memory_space<vmem>>, vector<8x1xf32>
    tpu.vector_store %arg7[%c0_27, %c0_28], %21 {strides = array<i32>} : memref<8x1xf32, #tpu.memory_space<vmem>>, vector<8x1xf32>,
    %c0_i32_29 = arith.constant 0 : i32
    %47 = arith.cmpi eq, %arg1, %c0_i32_29 : i32
    %48 = arith.extui %47 : i1 to i32
    %c0_i32_30 = arith.constant 0 : i32
    %49 = arith.cmpi ne, %48, %c0_i32_30 : i32
    scf.if %49 {
      %c0_31 = arith.constant 0 : index
      %c0_32 = arith.constant 0 : index
      %50 = vector.load %arg9[%c0_31, %c0_32] : memref<8x1xf32, #tpu.memory_space<vmem>>, vector<8x1xf32>
      %51 = math.log %50 : vector<8x1xf32>
      %c0_33 = arith.constant 0 : index
      %c0_34 = arith.constant 0 : index
      %52 = vector.load %arg8[%c0_33, %c0_34] : memref<8x1xf32, #tpu.memory_space<vmem>>, vector<8x1xf32>
      %53 = math.log %52 : vector<8x1xf32>
      %54 = arith.subf %51, %53 : vector<8x1xf32>
      %c0_35 = arith.constant 0 : index
      %c0_36 = arith.constant 0 : index
      %55 = vector.load %arg6[%c0_35, %c0_36] : memref<8x1xf32, #tpu.memory_space<vmem>>, vector<8x1xf32>
      tpu.vector_store %arg6[%c0_35, %c0_36], %54 {strides = array<i32>} : memref<8x1xf32, #tpu.memory_space<vmem>>, vector<8x1xf32>,
    } else {
    }
    return
  }
  func.func @transform_0(%arg0: i32, %arg1: i32) -> (i32, i32) {
    %c0_i32 = arith.constant 0 : i32
    %c0_i32_0 = arith.constant 0 : i32
    return %arg0, %c0_i32 : i32, i32
  }
  func.func @transform_1(%arg0: i32, %arg1: i32) -> (i32, i32) {
    %c0_i32 = arith.constant 0 : i32
    %c0_i32_0 = arith.constant 0 : i32
    return %c0_i32, %arg1 : i32, i32
  }
  func.func @transform_2(%arg0: i32, %arg1: i32) -> (i32, i32) {
    %c0_i32 = arith.constant 0 : i32
    %c0_i32_0 = arith.constant 0 : i32
    return %arg0, %c0_i32 : i32, i32
  }
  func.func @transform_3(%arg0: i32, %arg1: i32) -> (i32, i32) {
    %c0_i32 = arith.constant 0 : i32
    %c0_i32_0 = arith.constant 0 : i32
    return %arg1, %c0_i32 : i32, i32
  }
  func.func @transform_4(%arg0: i32, %arg1: i32) -> (i32, i32) {
    %c0_i32 = arith.constant 0 : i32
    %c0_i32_0 = arith.constant 0 : i32
    return %arg0, %c0_i32 : i32, i32
  }
}

</mosaic_0001>

<llo_original>
// kernel: tpu_custom_call.1
$region0: #{tpu_custom_call.1}
  #allocation0 [shape = 'u32[]', space=smem, size = 0x4, offset = 0x4, fixed_abs, tag = 'smem constant byte address 0x4 - core index']
  #allocation1 [shape = 'u32[144,128]{1,0:T(1,128)}', space=vmem, size = 0x12000, scoped, tag = 'internal scratch']
  #allocation2 [shape = 'f32[8,1]{1,0:T(8,128)}', space=vmem, size = 0x1000, scoped, tag = 'scratch operand']
  #allocation3 [shape = 'f32[8,1]{1,0:T(8,128)}', space=vmem, size = 0x1000, scoped, tag = 'scratch operand']
  #allocation4 [shape = 'f32[8,1]{1,0:T(8,128)}', space=vmem, size = 0x1000, scoped, tag = 'scratch operand']
  %s0 = inlined_call_operand.vmem [shape: s32[8,1], index: 0, kind: input, shape index: {}]
  %s1 = inlined_call_operand.hbm [shape: s32[1,8], index: 1, kind: input, shape index: {}]
  %s2 = inlined_call_operand.vmem [shape: f32[8,32], index: 2, kind: input, shape index: {}]
  %s3 = inlined_call_operand.vmem [shape: f32[8,32], index: 3, kind: input, shape index: {}]
  %s4 = inlined_call_operand.vmem [shape: f32[8,1], index: 4, kind: output, shape index: {}]
  %s5 = sld [smem:[#allocation0]]
  $region46: #{tpu_custom_call.1} parent=0
    _
  %s7 = ssub.s32 1, %s5
  %s8 = scalar_select 0, %s7, %s5
  $region1: #{tpu_custom_call.1} parent=0
    #allocation5 [shape = 'u8[512]{0}', space=vmem, size = 0x400, scoped, tag = 'input window, operand 1, single buffered']
    #allocation6 [shape = 's32[1]{0}', space=sflag, size = 0x4, scoped, tag = 'scoped memory for tpu_custom_call.1']
    %9 = vsyncpa [#allocation6], 0
    // Predicated region
    $region2: #{tpu_custom_call.1} parent=1 // pred_check
      _
    $region3: #{tpu_custom_call.1} parent=1 // pred_check_branch
      %11 = sbr.rel (0) target = $region5
    $region4: #{tpu_custom_call.1} parent=1 // pred_region
      _
    $region5: #{tpu_custom_call.1} parent=1 // pred_fallthru
      _
    // Predicated region
    $region6: #{tpu_custom_call.1} parent=1 // pred_check
      _
    $region7: #{tpu_custom_call.1} parent=1 // pred_check_branch
      %13 = sbr.rel (0) target = $region9
    $region8: #{tpu_custom_call.1} parent=1 // pred_region
      %s15 = ssub.s32 16, 16
      %16 = vsyncadd [#allocation6], %s15
      %s18 = sshll.u32 [#allocation5], 4
      %s19 = int_to_ptr.vmem [resolvable:$true] %s18
      %21 = dma.hbm_to_vmem [thread:$0]  %s1, 16, %s19, [#allocation6]
    $region9: #{tpu_custom_call.1} parent=1 // pred_fallthru
      _
    // Predicated region
    $region10: #{tpu_custom_call.1} parent=1 // pred_check
      _
    $region11: #{tpu_custom_call.1} parent=1 // pred_check_branch
      %23 = sbr.rel (0) target = $region13
    $region12: #{tpu_custom_call.1} parent=1 // pred_region
      _
    $region13: #{tpu_custom_call.1} parent=1 // pred_fallthru
      _
    // Predicated region
    $region14: #{tpu_custom_call.1} parent=1 // pred_check
      _
    $region15: #{tpu_custom_call.1} parent=1 // pred_check_branch
      %25 = sbr.rel (0) target = $region17
    $region16: #{tpu_custom_call.1} parent=1 // pred_region
      _
    $region17: #{tpu_custom_call.1} parent=1 // pred_fallthru
      _
    // Predicated region
    $region18: #{tpu_custom_call.1} parent=1 // pred_check
      _
    $region19: #{tpu_custom_call.1} parent=1 // pred_check_branch
      %27 = sbr.rel (0) target = $region21
    $region20: #{tpu_custom_call.1} parent=1 // pred_region
      %28 = dma.done [#allocation6], 16
    $region21: #{tpu_custom_call.1} parent=1 // pred_fallthru
      _
    %p29 = scmp.eq.s32.totalorder 0, 0
    // Predicated region
    $region22: #{tpu_custom_call.1} parent=1 // pred_check
      %p30 = pneg %p29
    $region23: #{tpu_custom_call.1} parent=1 // pred_check_branch
      %32 = sbr.rel (%p30) target = $region25
    $region24: #{tpu_custom_call.1} parent=1 // pred_region
      %vm33 = vcmask 7168
      %34 = vst.msk [vmem:[#allocation2] sm:$0xff] %vm33, -inf
      %35 = vst.msk [vmem:[#allocation3] sm:$0xff] %vm33, 0.0
      %36 = vst.msk [vmem:[#allocation4] sm:$0xff] %vm33, 0.0
    $region25: #{tpu_custom_call.1} parent=1 // pred_fallthru
      _
    %v37 = vld [vmem:[%s2] sm:$0xff]
    %v38 = vld [vmem:[%s3] sm:$0xff]
    %vm39 = vcmask 261120
    %v41 = vsel %vm39, %v37, 0
    %v44 = vsel %vm39, %v38, 0
    %46 = vmatprep.subr.mxu0 0.0
    %47 = vmatpush1.xpose.msra.mxu0 %v44
    %48 = vmatprep.subr.mxu0 0.0
    %49 = vmatpush1.xpose.msra.mxu0 0.0
    %50 = vmatprep.subr.mxu0 0.0
    %51 = vmatpush1.xpose.msra.mxu0 0.0
    %52 = vmatprep.subr.mxu0 0.0
    %53 = vmatpush1.xpose.msra.mxu0 0.0
    %54 = vmatprep.subr.mxu0 0.0
    %55 = vmatpush1.xpose.msra.mxu0 0.0
    %56 = vmatprep.subr.mxu0 0.0
    %57 = vmatpush1.xpose.msra.mxu0 0.0
    %58 = vmatprep.subr.mxu0 0.0
    %59 = vmatpush1.xpose.msra.mxu0 0.0
    %60 = vmatprep.subr.mxu0 0.0
    %61 = vmatpush1.xpose.msra.mxu0 0.0
    %62 = vmatprep.subr.mxu0 0.0
    %63 = vmatpush1.xpose.msra.mxu0 0.0
    %64 = vmatprep.subr.mxu0 0.0
    %65 = vmatpush1.xpose.msra.mxu0 0.0
    %66 = vmatprep.subr.mxu0 0.0
    %67 = vmatpush1.xpose.msra.mxu0 0.0
    %68 = vmatprep.subr.mxu0 0.0
    %69 = vmatpush1.xpose.msra.mxu0 0.0
    %70 = vmatprep.subr.mxu0 0.0
    %71 = vmatpush1.xpose.msra.mxu0 0.0
    %72 = vmatprep.subr.mxu0 0.0
    %73 = vmatpush1.xpose.msra.mxu0 0.0
    %74 = vmatprep.subr.mxu0 0.0
    %75 = vmatpush1.xpose.msra.mxu0 0.0
    %76 = vmatprep.subr.mxu0 0.0
    %77 = vmatpush1.xpose.msra.mxu0 0.0
    %78 = vmatprep.subr.mxu0 0.0
    %79 = vmatpush1.xpose.msra.mxu0 0.0
    %80 = vmatprep.subr.mxu0 0.0
    %81 = vmatpush1.xpose.msra.mxu0 0.0
    %82 = vmatprep.subr.mxu0 0.0
    %83 = vmatpush1.xpose.msra.mxu0 0.0
    %84 = vmatprep.subr.mxu0 0.0
    %85 = vmatpush1.xpose.msra.mxu0 0.0
    %86 = vmatprep.subr.mxu0 0.0
    %87 = vmatpush1.xpose.msra.mxu0 0.0
    %88 = vmatprep.subr.mxu0 0.0
    %89 = vmatpush1.xpose.msra.mxu0 0.0
    %90 = vmatprep.subr.mxu0 0.0
    %91 = vmatpush1.xpose.msra.mxu0 0.0
    %92 = vmatprep.subr.mxu0 0.0
    %93 = vmatpush1.xpose.msra.mxu0 0.0
    %94 = vmatprep.subr.mxu0 0.0
    %95 = vmatpush1.xpose.msra.mxu0 0.0
    %96 = vmatprep.subr.mxu0 0.0
    %97 = vmatpush1.xpose.msra.mxu0 0.0
    %98 = vmatprep.subr.mxu0 0.0
    %99 = vmatpush1.xpose.msra.mxu0 0.0
    %100 = vmatprep.subr.mxu0 0.0
    %101 = vmatpush1.xpose.msra.mxu0 0.0
    %102 = vmatprep.subr.mxu0 0.0
    %103 = vmatpush1.xpose.msra.mxu0 0.0
    %104 = vmatprep.subr.mxu0 0.0
    %105 = vmatpush1.xpose.msra.mxu0 0.0
    %106 = vmatprep.subr.mxu0 0.0
    %107 = vmatpush1.xpose.msra.mxu0 0.0
    %108 = vmatprep.subr.mxu0 0.0
    %109 = vmatpush1.xpose.msra.mxu0 0.0
    %110 = vmatprep.mubr.f32.mxu0 0.0
    %111 = vmatmul.mubr.f32.gmra.mrb[0].mxu0 %v41
    %v112 = vpop.f32.mrb[0].mxu0
    %v113 = vadd.f32 0.0, %v112
    %v114 = vpop.f32.mrb[0].mxu0
    %115 = vdwg.mxu0
    %v116 = vmul.f32 %v113, 2.0
    %s117 = smul.u32 0, 8
    %s118 = smul.u32 0, 8
    %s119 = sadd.s32 %s118, 8
    %p120 = scmp.lt.s32.totalorder %s117, %s119
    %s121 = sadd.s32 %s117, 8
    %p122 = scmp.lt.s32.totalorder %s118, %s121
    %p123 = pnand %p120, %p122
    %p124 = pneg %p123
    // Predicated region
    $region26: #{tpu_custom_call.1} parent=1 // pred_check
      _
    $region27: #{tpu_custom_call.1} parent=1 // pred_check_branch
      %126 = sbr.rel (%p123) target = $region29
    $region28: #{tpu_custom_call.1} parent=1 // pred_region
      %v127 = vlaneseq
      %v128 = vshrl.u32 %v127, 7
      %v129 = vstv %s117
      %v130 = vadd.s32 %v128, %v129
      %v131 = vlaneseq
      %v132 = vand.u32 %v131, 127
      %v133 = vstv %s118
      %v134 = vadd.s32 %v132, %v133
      %vm135 = vcmp.eq.s32.totalorder %v130, %v134
      %v136 = vsel %vm135, -inf, %v116
    $region29: #{tpu_custom_call.1} parent=1 // pred_fallthru
      %v137 = vphi 0, %v136
    // Predicated region
    $region30: #{tpu_custom_call.1} parent=1 // pred_check
      %p138 = pneg %p123
    $region31: #{tpu_custom_call.1} parent=1 // pred_check_branch
      %140 = sbr.rel (%p138) target = $region33
    $region32: #{tpu_custom_call.1} parent=1 // pred_region
      _
    $region33: #{tpu_custom_call.1} parent=1 // pred_fallthru
      %v141 = vphi %v137, %v116
    %v142 = vld [vmem:[#allocation2] sm:$0xff]
    %vm143 = vcmask 64512
    %v144 = vsel %vm143, %v141, -inf
    %145 = vmax.xlane.f32.xlu0 %v144
    %v146 = vpop.xlane.xlu0 %145
    %v147 = vmax.f32 %v142, %v146
    %v148 = vsub.f32 %v142, %v147
    %v149 = vmul.f32 %v148, 1.442695
    %v150 = vpow.pop %v149
    %152 = vset.pattern.permute.xlu0 0
    %153 = vperm.xlu0 %152, %v147
    %v154 = vpop.permute.xlu0 %153
    %v156 = vsub.f32 %v141, %v154
    %v157 = vmul.f32 %v156, 1.442695
    %v158 = vpow.pop %v157
    %v159 = vld [vmem:[%s0] sm:$0xff]
    %v160 = vld [vmem:[#allocation5] sm:$0x1]
    %161 = vset.pattern.permute.xlu0 0
    %162 = vperm.xlu0 %161, %v159
    %v163 = vpop.permute.xlu0 %162
    %v164 = vlaneseq
    %v165 = vshrl.u32 %v164, 7
    %v166 = vsub.s32 0, %v165
    %v167 = vrot.slane %v160, %v166
    %vm168 = vcmp.eq.s32.totalorder %v163, %v167
    %v169 = vld [vmem:[#allocation3] sm:$0xff]
    %v170 = vmul.f32 %v150, %v169
    %v171 = vsel %vm168, %v158, 0.0
    %v172 = vsel %vm143, %v171, 0.0
    %173 = vadd.xlane.f32.xlu0 %v172
    %v174 = vpop.xlane.xlu0 %173
    %v175 = vadd.f32 %v170, %v174
    %vm176 = vcmask 7168
    %177 = vst.msk [vmem:[#allocation3] sm:$0xff] %vm176, %v175
    %v178 = vld [vmem:[#allocation4] sm:$0xff]
    %v179 = vmul.f32 %v150, %v178
    %v180 = vsel %vm143, %v158, 0.0
    %181 = vadd.xlane.f32.xlu0 %v180
    %v182 = vpop.xlane.xlu0 %181
    %v183 = vadd.f32 %v179, %v182
    %184 = vst.msk [vmem:[#allocation4] sm:$0xff] %vm176, %v183
    %185 = vst.msk [vmem:[#allocation2] sm:$0xff] %vm176, %v147
    // Predicated region
    $region34: #{tpu_custom_call.1} parent=1 // pred_check
      %p186 = pneg %p29
    $region35: #{tpu_custom_call.1} parent=1 // pred_check_branch
      %188 = sbr.rel (%p186) target = $region37
    $region36: #{tpu_custom_call.1} parent=1 // pred_region
      %v189 = vld [vmem:[#allocation4] sm:$0xff]
      %v190 = vlog2.pop %v189
      %v191 = vmul.f32 %v190, 0.6931472
      %v192 = vld [vmem:[#allocation3] sm:$0xff]
      %v193 = vlog2.pop %v192
      %v194 = vmul.f32 %v193, 0.6931472
      %v195 = vsub.f32 %v191, %v194
      %196 = vst.msk [vmem:[%s4] sm:$0xff] %vm176, %v195
    $region37: #{tpu_custom_call.1} parent=1 // pred_fallthru
      _
    // Predicated region
    $region38: #{tpu_custom_call.1} parent=1 // pred_check
      _
    $region39: #{tpu_custom_call.1} parent=1 // pred_check_branch
      %198 = sbr.rel (0) target = $region41
    $region40: #{tpu_custom_call.1} parent=1 // pred_region
      _
    $region41: #{tpu_custom_call.1} parent=1 // pred_fallthru
      _
    // Predicated region
    $region42: #{tpu_custom_call.1} parent=1 // pred_check
      _
    $region43: #{tpu_custom_call.1} parent=1 // pred_check_branch
      %200 = sbr.rel (0) target = $region45
    $region44: #{tpu_custom_call.1} parent=1 // pred_region
      _
    $region45: #{tpu_custom_call.1} parent=1 // pred_fallthru
      _
    %201 = vsyncpa [#allocation6], 1

</llo_original>
